<compile_context>
chip_gen: v5e
topology: v5e:2x2
jax: 0.10.0
libtpu: 0.0.40
codegen_flags: <defaults>
</compile_context>

<pallas_src>
import jax
import jax.numpy as jnp
from jax import lax
from jax.experimental import pallas as pl
from jax.experimental.pallas import tpu as pltpu


def _round_up(n, m):
    return ((n + m - 1) // m) * m


def _num_tensorcores():
    """2 on v7x (two TensorCores addressable from one pallas_call), else 1."""
    try:
        kind = jax.devices()[0].device_kind.lower()
    except Exception:
        return 1
    return 2 if ("v7" in kind or "7x" in kind) else 1


def _qnetwork_kernel(x_ref, *refs):
    """Fused MLP.  refs = (w0, b0, w1, b1, ..., w_last, b_last, out_T)."""
    *wb, ot_ref = refs
    n_layers = len(wb) // 2

    # bf16-resident activations; bias add / ReLU / accumulation in f32.
    h = x_ref[...].astype(jnp.bfloat16)               # (tile, state) bf16

    for l in range(n_layers - 1):
        w = wb[2 * l][...]                            # (in, out)  bf16
        b = wb[2 * l + 1][...]                        # (1, out)   f32
        y = jnp.dot(h, w, preferred_element_type=jnp.float32)
        h = jnp.maximum(y + b, 0.0).astype(jnp.bfloat16)

    # Final layer, computed transposed so the output store is lane-dense:
    #   out_T[a, m] = sum_k W_last[a, k] * h[m, k]   (A @ B^T on the MXU)
    w = wb[-2][...]                                   # (A_pad, in) bf16
    b = wb[-1][...]                                   # (A_pad, 1)  f32
    y_t = lax.dot_general(w, h,
                          dimension_numbers=(((1,), (1,)), ((), ())),
                          preferred_element_type=jnp.float32)
    # The PyTorch forward applies F.relu after every layer, including the last.
    ot_ref[...] = jnp.maximum(y_t + b, 0.0).astype(ot_ref.dtype)


def qnetwork_forward(x, params, *, batch_tile=2048):
    """x: (B, state_size) f32.  params: list of (W_t (in,out), b (out,)) f32.

    Returns (B, action_size) f32 == relu(...relu(x @ W0 + b0)... @ Wn + bn).
    """
    B, state_size = x.shape
    action_size = params[-1][0].shape[1]
    a_pad = _round_up(action_size, 8)                 # full-sublane output rows

    # ---- batch tiling ------------------------------------------------------
    ncores = _num_tensorcores()
    cap = _round_up(max(128, min(batch_tile, 2048)), 128)
    if ncores > 1:
        # Even per-core split on v7x; on 1-TC chips use the fewest grid steps.
        tile = min(_round_up(pl.cdiv(B, ncores), 128), cap)
    else:
        tile = min(_round_up(B, 128), cap)
    grid = pl.cdiv(B, tile)
    if ncores > 1:
        grid = _round_up(grid, ncores)                # equal work per TC
    B_pad = grid * tile

    if B_pad != B:
        x = jnp.pad(x, ((0, B_pad - B), (0, 0)))      # padded rows sliced off below

    # ---- pack parameters ---------------------------------------------------
    flat_args = []
    in_specs = [pl.BlockSpec((tile, state_size), lambda i: (i, 0))]
    n_layers = len(params)
    for li, (w_t, b) in enumerate(params):
        is_last = li == n_layers - 1
        if is_last:
            # Transposed (action, in), zero-padded to a_pad sublanes.
            w = jnp.pad(w_t.T.astype(jnp.bfloat16),
                        ((0, a_pad - action_size), (0, 0)))
            b2d = jnp.pad(b.reshape(-1, 1).astype(jnp.float32),
                          ((0, a_pad - action_size), (0, 0)))
        else:
            w = w_t.astype(jnp.bfloat16)              # bf16 MXU operand in HBM
            b2d = b.reshape(1, -1).astype(jnp.float32)
        flat_args += [w, b2d]
        # Full-tensor blocks, constant index map -> fetched once, VMEM-resident.
        in_specs.append(pl.BlockSpec(w.shape, lambda i: (0, 0)))
        in_specs.append(pl.BlockSpec(b2d.shape, lambda i: (0, 0)))

    # Transposed output: last dim is the batch tile -> lane-dense stores.
    out_spec = pl.BlockSpec((a_pad, tile), lambda i: (0, i))
    out_shape = jax.ShapeDtypeStruct((a_pad, B_pad), jnp.float32)

    def _call(semantics):
        return pl.pallas_call(
            _qnetwork_kernel,
            out_shape=out_shape,
            grid_spec=pltpu.PrefetchScalarGridSpec(
                num_scalar_prefetch=0,
                grid=(grid,),
                in_specs=in_specs,
                out_specs=out_spec,
            ),
            compiler_params=pltpu.CompilerParams(
                dimension_semantics=semantics,
                vmem_limit_bytes=64 * 1024 * 1024),
        )(x, *flat_args)

    if ncores > 1 and grid % ncores == 0:
        # CORE_PARALLEL is what actually shards the batch axis across the two
        # v7x TensorCores; fall back to plain PARALLEL if unsupported.
        try:
            out_t = _call((pltpu.CORE_PARALLEL,))
        except Exception:
            out_t = _call((pltpu.PARALLEL,))
    else:
        out_t = _call((pltpu.PARALLEL,))

    # Callers that can consume the (action, B) layout directly may skip this
    # tiny slice+transpose for latency-critical small-batch inference.
    return out_t[:action_size, :B].T                  # (B, action_size)


def init_qnetwork_params(key, state_size, action_size, fc_units=(128, 64, 32)):
    """Deterministic init mirroring torch.nn.Linear default (U(+/- 1/sqrt(fan_in))).

    Returns list of (W_transposed (in, out), b (out,)) float32.
    """
    sizes_in = [state_size] + list(fc_units)
    sizes_out = list(fc_units) + [action_size]
    params = []
    for fan_in, fan_out in zip(sizes_in, sizes_out):
        key, kw, kb = jax.random.split(key, 3)
        bound = 1.0 / jnp.sqrt(jnp.float32(fan_in))
        w_t = jax.random.uniform(kw, (fan_in, fan_out), jnp.float32,
                                 minval=-bound, maxval=bound)
        b = jax.random.uniform(kb, (fan_out,), jnp.float32,
                               minval=-bound, maxval=bound)
        params.append((w_t, b))
    return params


def qnetwork_reference(x, params, *, match_kernel_dtype=False):
    """Pure-JAX reference of the PyTorch forward (optionally with bf16 matmuls)."""
    h = x
    for w_t, b in params:
        if match_kernel_dtype:
            y = jnp.dot(h.astype(jnp.bfloat16), w_t.astype(jnp.bfloat16),
                        preferred_element_type=jnp.float32)
        else:
            y = h @ w_t
        h = jnp.maximum(y + b, 0.0)
    return h


if __name__ == "__main__":
    key = jax.random.PRNGKey(0)
    state_size = 8
    action_size = 4
    batch = 500   # not a tile multiple -> exercises batch padding

    k_params, k_x = jax.random.split(key)
    params = init_qnetwork_params(k_params, state_size, action_size,
                                  fc_units=(128, 64, 32))
    x = jax.random.normal(k_x, (batch, state_size), jnp.float32)

    out = jax.block_until_ready(qnetwork_forward(x, params))
    assert out.shape == (batch, action_size)

    ref_mx = qnetwork_reference(x, params, match_kernel_dtype=True)
    ref_f32 = qnetwork_reference(x, params, match_kernel_dtype=False)
    assert jnp.allclose(out, ref_mx, atol=1e-2, rtol=1e-2), "mismatch vs bf16 reference"
    assert jnp.allclose(out, ref_f32, atol=1e-1, rtol=1e-1), "mismatch vs f32 reference"

    print("KERNEL_OK")
</pallas_src>

<mosaic_0001>
module attributes {stable_mosaic.version = 11 : i64} {
  func.func @_qnetwork_kernel(%arg0: i32, %arg1: memref<512x8xf32, #tpu.memory_space<vmem>>, %arg2: memref<8x128xbf16, #tpu.memory_space<vmem>>, %arg3: memref<1x128xf32, #tpu.memory_space<vmem>>, %arg4: memref<128x64xbf16, #tpu.memory_space<vmem>>, %arg5: memref<1x64xf32, #tpu.memory_space<vmem>>, %arg6: memref<64x32xbf16, #tpu.memory_space<vmem>>, %arg7: memref<1x32xf32, #tpu.memory_space<vmem>>, %arg8: memref<8x32xbf16, #tpu.memory_space<vmem>>, %arg9: memref<8x1xf32, #tpu.memory_space<vmem>>, %arg10: memref<8x512xf32, #tpu.memory_space<vmem>>) attributes {dimension_semantics = [#tpu.dimension_semantics<parallel>], iteration_bounds = array<i64: 1>, scalar_prefetch = 0 : i64, scratch_operands = 0 : i64, tpu.core_type = #tpu.core_type<tc>, window_params = [{transform_indices = @transform_0, window_bounds = array<i64: 512, 8>}, {pipeline_mode = #tpu.pipeline_mode<synchronous>, transform_indices = @transform_1, window_bounds = array<i64: 8, 128>}, {pipeline_mode = #tpu.pipeline_mode<synchronous>, transform_indices = @transform_2, window_bounds = array<i64: 1, 128>}, {pipeline_mode = #tpu.pipeline_mode<synchronous>, transform_indices = @transform_3, window_bounds = array<i64: 128, 64>}, {pipeline_mode = #tpu.pipeline_mode<synchronous>, transform_indices = @transform_4, window_bounds = array<i64: 1, 64>}, {pipeline_mode = #tpu.pipeline_mode<synchronous>, transform_indices = @transform_5, window_bounds = array<i64: 64, 32>}, {pipeline_mode = #tpu.pipeline_mode<synchronous>, transform_indices = @transform_6, window_bounds = array<i64: 1, 32>}, {pipeline_mode = #tpu.pipeline_mode<synchronous>, transform_indices = @transform_7, window_bounds = array<i64: 8, 32>}, {pipeline_mode = #tpu.pipeline_mode<synchronous>, transform_indices = @transform_8, window_bounds = array<i64: 8, 1>}, {transform_indices = @transform_9, window_bounds = array<i64: 8, 512>}]} {
    %c0 = arith.constant 0 : index
    %c0_0 = arith.constant 0 : index
    %0 = vector.load %arg1[%c0, %c0_0] : memref<512x8xf32, #tpu.memory_space<vmem>>, vector<512x8xf32>
    %1 = arith.truncf %0 : vector<512x8xf32> to vector<512x8xbf16>
    %c0_1 = arith.constant 0 : index
    %c0_2 = arith.constant 0 : index
    %2 = vector.load %arg2[%c0_1, %c0_2] : memref<8x128xbf16, #tpu.memory_space<vmem>>, vector<8x128xbf16>
    %c0_3 = arith.constant 0 : index
    %c0_4 = arith.constant 0 : index
    %3 = vector.load %arg3[%c0_3, %c0_4] : memref<1x128xf32, #tpu.memory_space<vmem>>, vector<1x128xf32>
    %cst = arith.constant dense<0.000000e+00> : vector<512x128xf32>
    %4 = tpu.matmul %1, %2, %cst {dimension_numbers = #tpu.dot_dimension_numbers<[1], [0], [0], [1], [0, 0, 1, 1], [], []>} : vector<512x8xbf16>, vector<8x128xbf16>, vector<512x128xf32> -> vector<512x128xf32>
    %5 = vector.broadcast %3 : vector<1x128xf32> to vector<512x128xf32>
    %6 = arith.addf %4, %5 : vector<512x128xf32>
    %cst_5 = arith.constant 0.000000e+00 : f32
    %7 = vector.broadcast %cst_5 : f32 to vector<512x128xf32>
    %8 = arith.maximumf %6, %7 : vector<512x128xf32>
    %9 = arith.truncf %8 : vector<512x128xf32> to vector<512x128xbf16>
    %c0_6 = arith.constant 0 : index
    %c0_7 = arith.constant 0 : index
    %10 = vector.load %arg4[%c0_6, %c0_7] : memref<128x64xbf16, #tpu.memory_space<vmem>>, vector<128x64xbf16>
    %c0_8 = arith.constant 0 : index
    %c0_9 = arith.constant 0 : index
    %11 = vector.load %arg5[%c0_8, %c0_9] : memref<1x64xf32, #tpu.memory_space<vmem>>, vector<1x64xf32>
    %cst_10 = arith.constant dense<0.000000e+00> : vector<512x64xf32>
    %12 = tpu.matmul %9, %10, %cst_10 {dimension_numbers = #tpu.dot_dimension_numbers<[1], [0], [0], [1], [0, 0, 1, 1], [], []>} : vector<512x128xbf16>, vector<128x64xbf16>, vector<512x64xf32> -> vector<512x64xf32>
    %13 = vector.broadcast %11 : vector<1x64xf32> to vector<512x64xf32>
    %14 = arith.addf %12, %13 : vector<512x64xf32>
    %cst_11 = arith.constant 0.000000e+00 : f32
    %15 = vector.broadcast %cst_11 : f32 to vector<512x64xf32>
    %16 = arith.maximumf %14, %15 : vector<512x64xf32>
    %17 = arith.truncf %16 : vector<512x64xf32> to vector<512x64xbf16>
    %c0_12 = arith.constant 0 : index
    %c0_13 = arith.constant 0 : index
    %18 = vector.load %arg6[%c0_12, %c0_13] : memref<64x32xbf16, #tpu.memory_space<vmem>>, vector<64x32xbf16>
    %c0_14 = arith.constant 0 : index
    %c0_15 = arith.constant 0 : index
    %19 = vector.load %arg7[%c0_14, %c0_15] : memref<1x32xf32, #tpu.memory_space<vmem>>, vector<1x32xf32>
    %cst_16 = arith.constant dense<0.000000e+00> : vector<512x32xf32>
    %20 = tpu.matmul %17, %18, %cst_16 {dimension_numbers = #tpu.dot_dimension_numbers<[1], [0], [0], [1], [0, 0, 1, 1], [], []>} : vector<512x64xbf16>, vector<64x32xbf16>, vector<512x32xf32> -> vector<512x32xf32>
    %21 = vector.broadcast %19 : vector<1x32xf32> to vector<512x32xf32>
    %22 = arith.addf %20, %21 : vector<512x32xf32>
    %cst_17 = arith.constant 0.000000e+00 : f32
    %23 = vector.broadcast %cst_17 : f32 to vector<512x32xf32>
    %24 = arith.maximumf %22, %23 : vector<512x32xf32>
    %25 = arith.truncf %24 : vector<512x32xf32> to vector<512x32xbf16>
    %c0_18 = arith.constant 0 : index
    %c0_19 = arith.constant 0 : index
    %26 = vector.load %arg8[%c0_18, %c0_19] : memref<8x32xbf16, #tpu.memory_space<vmem>>, vector<8x32xbf16>
    %c0_20 = arith.constant 0 : index
    %c0_21 = arith.constant 0 : index
    %27 = vector.load %arg9[%c0_20, %c0_21] : memref<8x1xf32, #tpu.memory_space<vmem>>, vector<8x1xf32>
    %cst_22 = arith.constant dense<0.000000e+00> : vector<8x512xf32>
    %28 = tpu.matmul %26, %25, %cst_22 {dimension_numbers = #tpu.dot_dimension_numbers<[1], [1], [0], [0], [0, 0, 1, 0], [], []>} : vector<8x32xbf16>, vector<512x32xbf16>, vector<8x512xf32> -> vector<8x512xf32>
    %29 = vector.broadcast %27 : vector<8x1xf32> to vector<8x512xf32>
    %30 = arith.addf %28, %29 : vector<8x512xf32>
    %cst_23 = arith.constant 0.000000e+00 : f32
    %31 = vector.broadcast %cst_23 : f32 to vector<8x512xf32>
    %32 = arith.maximumf %30, %31 : vector<8x512xf32>
    %c0_24 = arith.constant 0 : index
    %c0_25 = arith.constant 0 : index
    %33 = vector.load %arg10[%c0_24, %c0_25] : memref<8x512xf32, #tpu.memory_space<vmem>>, vector<8x512xf32>
    tpu.vector_store %arg10[%c0_24, %c0_25], %32 {strides = array<i32>} : memref<8x512xf32, #tpu.memory_space<vmem>>, vector<8x512xf32>,
    return
  }
  func.func @transform_0(%arg0: i32) -> (i32, i32) {
    %c0_i32 = arith.constant 0 : i32
    %c0_i32_0 = arith.constant 0 : i32
    return %arg0, %c0_i32 : i32, i32
  }
  func.func @transform_1(%arg0: i32) -> (i32, i32) {
    %c0_i32 = arith.constant 0 : i32
    %c0_i32_0 = arith.constant 0 : i32
    %c0_i32_1 = arith.constant 0 : i32
    return %c0_i32, %c0_i32_0 : i32, i32
  }
  func.func @transform_2(%arg0: i32) -> (i32, i32) {
    %c0_i32 = arith.constant 0 : i32
    %c0_i32_0 = arith.constant 0 : i32
    %c0_i32_1 = arith.constant 0 : i32
    return %c0_i32, %c0_i32_0 : i32, i32
  }
  func.func @transform_3(%arg0: i32) -> (i32, i32) {
    %c0_i32 = arith.constant 0 : i32
    %c0_i32_0 = arith.constant 0 : i32
    %c0_i32_1 = arith.constant 0 : i32
    return %c0_i32, %c0_i32_0 : i32, i32
  }
  func.func @transform_4(%arg0: i32) -> (i32, i32) {
    %c0_i32 = arith.constant 0 : i32
    %c0_i32_0 = arith.constant 0 : i32
    %c0_i32_1 = arith.constant 0 : i32
    return %c0_i32, %c0_i32_0 : i32, i32
  }
  func.func @transform_5(%arg0: i32) -> (i32, i32) {
    %c0_i32 = arith.constant 0 : i32
    %c0_i32_0 = arith.constant 0 : i32
    %c0_i32_1 = arith.constant 0 : i32
    return %c0_i32, %c0_i32_0 : i32, i32
  }
  func.func @transform_6(%arg0: i32) -> (i32, i32) {
    %c0_i32 = arith.constant 0 : i32
    %c0_i32_0 = arith.constant 0 : i32
    %c0_i32_1 = arith.constant 0 : i32
    return %c0_i32, %c0_i32_0 : i32, i32
  }
  func.func @transform_7(%arg0: i32) -> (i32, i32) {
    %c0_i32 = arith.constant 0 : i32
    %c0_i32_0 = arith.constant 0 : i32
    %c0_i32_1 = arith.constant 0 : i32
    return %c0_i32, %c0_i32_0 : i32, i32
  }
  func.func @transform_8(%arg0: i32) -> (i32, i32) {
    %c0_i32 = arith.constant 0 : i32
    %c0_i32_0 = arith.constant 0 : i32
    %c0_i32_1 = arith.constant 0 : i32
    return %c0_i32, %c0_i32_0 : i32, i32
  }
  func.func @transform_9(%arg0: i32) -> (i32, i32) {
    %c0_i32 = arith.constant 0 : i32
    %c0_i32_0 = arith.constant 0 : i32
    return %c0_i32, %arg0 : i32, i32
  }
}

</mosaic_0001>

<llo_original>
// kernel: tpu_custom_call.1
$region0: #{tpu_custom_call.1}
  #allocation0 [shape = 'u32[]', space=smem, size = 0x4, offset = 0x4, fixed_abs, tag = 'smem constant byte address 0x4 - core index']
  #allocation1 [shape = 'u32[72,128]{1,0:T(1,128)}', space=vmem, size = 0x9000, scoped, tag = 'internal scratch']
  %s0 = inlined_call_operand.vmem [shape: f32[512,8], index: 0, kind: input, shape index: {}]
  %s1 = inlined_call_operand.vmem [shape: bf16[8,128], index: 1, kind: input, shape index: {}]
  %s2 = inlined_call_operand.vmem [shape: f32[1,128], index: 2, kind: input, shape index: {}]
  %s3 = inlined_call_operand.vmem [shape: bf16[128,64], index: 3, kind: input, shape index: {}]
  %s4 = inlined_call_operand.vmem [shape: f32[1,64], index: 4, kind: input, shape index: {}]
  %s5 = inlined_call_operand.vmem [shape: bf16[64,32], index: 5, kind: input, shape index: {}]
  %s6 = inlined_call_operand.vmem [shape: f32[1,32], index: 6, kind: input, shape index: {}]
  %s7 = inlined_call_operand.vmem [shape: bf16[8,32], index: 7, kind: input, shape index: {}]
  %s8 = inlined_call_operand.vmem [shape: f32[8,1], index: 8, kind: input, shape index: {}]
  %s9 = inlined_call_operand.hbm [shape: f32[8,512], index: 9, kind: output, shape index: {}]
  %s10 = sld [smem:[#allocation0]]
  $region46: #{tpu_custom_call.1} parent=0
    _
  %s12 = ssub.s32 1, %s10
  %s13 = scalar_select 0, %s12, %s10
  $region1: #{tpu_custom_call.1} parent=0
    #allocation2 [shape = 'u8[16384]{0}', space=vmem, size = 0x4000, scoped, tag = 'output window, operand 0, single buffered']
    #allocation3 [shape = 's32[1]{0}', space=sflag, size = 0x4, scoped, tag = 'scoped memory for tpu_custom_call.1']
    %14 = vsyncpa [#allocation3], 0
    // Predicated region
    $region2: #{tpu_custom_call.1} parent=1 // pred_check
      _
    $region3: #{tpu_custom_call.1} parent=1 // pred_check_branch
      %16 = sbr.rel (0) target = $region5
    $region4: #{tpu_custom_call.1} parent=1 // pred_region
      _
    $region5: #{tpu_custom_call.1} parent=1 // pred_fallthru
      _
    // Predicated region
    $region6: #{tpu_custom_call.1} parent=1 // pred_check
      _
    $region7: #{tpu_custom_call.1} parent=1 // pred_check_branch
      %18 = sbr.rel (0) target = $region9
    $region8: #{tpu_custom_call.1} parent=1 // pred_region
      _
    $region9: #{tpu_custom_call.1} parent=1 // pred_fallthru
      _
    // Predicated region
    $region10: #{tpu_custom_call.1} parent=1 // pred_check
      _
    $region11: #{tpu_custom_call.1} parent=1 // pred_check_branch
      %20 = sbr.rel (0) target = $region13
    $region12: #{tpu_custom_call.1} parent=1 // pred_region
      _
    $region13: #{tpu_custom_call.1} parent=1 // pred_fallthru
      _
    // Predicated region
    $region14: #{tpu_custom_call.1} parent=1 // pred_check
      _
    $region15: #{tpu_custom_call.1} parent=1 // pred_check_branch
      %22 = sbr.rel (0) target = $region17
    $region16: #{tpu_custom_call.1} parent=1 // pred_region
      _
    $region17: #{tpu_custom_call.1} parent=1 // pred_fallthru
      _
    // Predicated region
    $region18: #{tpu_custom_call.1} parent=1 // pred_check
      _
    $region19: #{tpu_custom_call.1} parent=1 // pred_check_branch
      %24 = sbr.rel (0) target = $region21
    $region20: #{tpu_custom_call.1} parent=1 // pred_region
      _
    $region21: #{tpu_custom_call.1} parent=1 // pred_fallthru
      _
    // Predicated region
    $region22: #{tpu_custom_call.1} parent=1 // pred_check
      _
    $region23: #{tpu_custom_call.1} parent=1 // pred_check_branch
      %26 = sbr.rel (0) target = $region25
    $region24: #{tpu_custom_call.1} parent=1 // pred_region
      _
    $region25: #{tpu_custom_call.1} parent=1 // pred_fallthru
      _
    // Predicated region
    $region26: #{tpu_custom_call.1} parent=1 // pred_check
      _
    $region27: #{tpu_custom_call.1} parent=1 // pred_check_branch
      %28 = sbr.rel (0) target = $region29
    $region28: #{tpu_custom_call.1} parent=1 // pred_region
      _
    $region29: #{tpu_custom_call.1} parent=1 // pred_fallthru
      _
    // Predicated region
    $region30: #{tpu_custom_call.1} parent=1 // pred_check
      _
    $region31: #{tpu_custom_call.1} parent=1 // pred_check_branch
      %30 = sbr.rel (0) target = $region33
    $region32: #{tpu_custom_call.1} parent=1 // pred_region
      _
    $region33: #{tpu_custom_call.1} parent=1 // pred_fallthru
      _
    // Predicated region
    $region34: #{tpu_custom_call.1} parent=1 // pred_check
      _
    $region35: #{tpu_custom_call.1} parent=1 // pred_check_branch
      %32 = sbr.rel (0) target = $region37
    $region36: #{tpu_custom_call.1} parent=1 // pred_region
      _
    $region37: #{tpu_custom_call.1} parent=1 // pred_fallthru
      _
    %v34 = vld [vmem:[%s0] sm:$0xff]
    %v35 = vld [vmem:[%s0 + $0x8] sm:$0xff]
    %v36 = vld [vmem:[%s0 + $0x10] sm:$0xff]
    %v37 = vld [vmem:[%s0 + $0x18] sm:$0xff]
    %v38 = vld [vmem:[%s0 + $0x20] sm:$0xff]
    %v39 = vld [vmem:[%s0 + $0x28] sm:$0xff]
    %v40 = vld [vmem:[%s0 + $0x30] sm:$0xff]
    %v41 = vld [vmem:[%s0 + $0x38] sm:$0xff]
    %v42 = vld [vmem:[%s0 + $0x40] sm:$0xff]
    %v43 = vld [vmem:[%s0 + $0x48] sm:$0xff]
    %v44 = vld [vmem:[%s0 + $0x50] sm:$0xff]
    %v45 = vld [vmem:[%s0 + $0x58] sm:$0xff]
    %v46 = vld [vmem:[%s0 + $0x60] sm:$0xff]
    %v47 = vld [vmem:[%s0 + $0x68] sm:$0xff]
    %v48 = vld [vmem:[%s0 + $0x70] sm:$0xff]
    %v49 = vld [vmem:[%s0 + $0x78] sm:$0xff]
    %v50 = vld [vmem:[%s0 + $0x80] sm:$0xff]
    %v51 = vld [vmem:[%s0 + $0x88] sm:$0xff]
    %v52 = vld [vmem:[%s0 + $0x90] sm:$0xff]
    %v53 = vld [vmem:[%s0 + $0x98] sm:$0xff]
    %v54 = vld [vmem:[%s0 + $0xa0] sm:$0xff]
    %v55 = vld [vmem:[%s0 + $0xa8] sm:$0xff]
    %v56 = vld [vmem:[%s0 + $0xb0] sm:$0xff]
    %v57 = vld [vmem:[%s0 + $0xb8] sm:$0xff]
    %v58 = vld [vmem:[%s0 + $0xc0] sm:$0xff]
    %v59 = vld [vmem:[%s0 + $0xc8] sm:$0xff]
    %v60 = vld [vmem:[%s0 + $0xd0] sm:$0xff]
    %v61 = vld [vmem:[%s0 + $0xd8] sm:$0xff]
    %v62 = vld [vmem:[%s0 + $0xe0] sm:$0xff]
    %v63 = vld [vmem:[%s0 + $0xe8] sm:$0xff]
    %v64 = vld [vmem:[%s0 + $0xf0] sm:$0xff]
    %v65 = vld [vmem:[%s0 + $0xf8] sm:$0xff]
    %v66 = vld [vmem:[%s0 + $0x100] sm:$0xff]
    %v67 = vld [vmem:[%s0 + $0x108] sm:$0xff]
    %v68 = vld [vmem:[%s0 + $0x110] sm:$0xff]
    %v69 = vld [vmem:[%s0 + $0x118] sm:$0xff]
    %v70 = vld [vmem:[%s0 + $0x120] sm:$0xff]
    %v71 = vld [vmem:[%s0 + $0x128] sm:$0xff]
    %v72 = vld [vmem:[%s0 + $0x130] sm:$0xff]
    %v73 = vld [vmem:[%s0 + $0x138] sm:$0xff]
    %v74 = vld [vmem:[%s0 + $0x140] sm:$0xff]
    %v75 = vld [vmem:[%s0 + $0x148] sm:$0xff]
    %v76 = vld [vmem:[%s0 + $0x150] sm:$0xff]
    %v77 = vld [vmem:[%s0 + $0x158] sm:$0xff]
    %v78 = vld [vmem:[%s0 + $0x160] sm:$0xff]
    %v79 = vld [vmem:[%s0 + $0x168] sm:$0xff]
    %v80 = vld [vmem:[%s0 + $0x170] sm:$0xff]
    %v81 = vld [vmem:[%s0 + $0x178] sm:$0xff]
    %v82 = vld [vmem:[%s0 + $0x180] sm:$0xff]
    %v83 = vld [vmem:[%s0 + $0x188] sm:$0xff]
    %v84 = vld [vmem:[%s0 + $0x190] sm:$0xff]
    %v85 = vld [vmem:[%s0 + $0x198] sm:$0xff]
    %v86 = vld [vmem:[%s0 + $0x1a0] sm:$0xff]
    %v87 = vld [vmem:[%s0 + $0x1a8] sm:$0xff]
    %v88 = vld [vmem:[%s0 + $0x1b0] sm:$0xff]
    %v89 = vld [vmem:[%s0 + $0x1b8] sm:$0xff]
    %v90 = vld [vmem:[%s0 + $0x1c0] sm:$0xff]
    %v91 = vld [vmem:[%s0 + $0x1c8] sm:$0xff]
    %v92 = vld [vmem:[%s0 + $0x1d0] sm:$0xff]
    %v93 = vld [vmem:[%s0 + $0x1d8] sm:$0xff]
    %v94 = vld [vmem:[%s0 + $0x1e0] sm:$0xff]
    %v95 = vld [vmem:[%s0 + $0x1e8] sm:$0xff]
    %v96 = vld [vmem:[%s0 + $0x1f0] sm:$0xff]
    %v97 = vld [vmem:[%s0 + $0x1f8] sm:$0xff]
    %v98 = vpack.c.bf16 %v35, %v34
    %v99 = vpack.c.bf16 %v37, %v36
    %v100 = vpack.c.bf16 %v39, %v38
    %v101 = vpack.c.bf16 %v41, %v40
    %v102 = vpack.c.bf16 %v43, %v42
    %v103 = vpack.c.bf16 %v45, %v44
    %v104 = vpack.c.bf16 %v47, %v46
    %v105 = vpack.c.bf16 %v49, %v48
    %v106 = vpack.c.bf16 %v51, %v50
    %v107 = vpack.c.bf16 %v53, %v52
    %v108 = vpack.c.bf16 %v55, %v54
    %v109 = vpack.c.bf16 %v57, %v56
    %v110 = vpack.c.bf16 %v59, %v58
    %v111 = vpack.c.bf16 %v61, %v60
    %v112 = vpack.c.bf16 %v63, %v62
    %v113 = vpack.c.bf16 %v65, %v64
    %v114 = vpack.c.bf16 %v67, %v66
    %v115 = vpack.c.bf16 %v69, %v68
    %v116 = vpack.c.bf16 %v71, %v70
    %v117 = vpack.c.bf16 %v73, %v72
    %v118 = vpack.c.bf16 %v75, %v74
    %v119 = vpack.c.bf16 %v77, %v76
    %v120 = vpack.c.bf16 %v79, %v78
    %v121 = vpack.c.bf16 %v81, %v80
    %v122 = vpack.c.bf16 %v83, %v82
    %v123 = vpack.c.bf16 %v85, %v84
    %v124 = vpack.c.bf16 %v87, %v86
    %v125 = vpack.c.bf16 %v89, %v88
    %v126 = vpack.c.bf16 %v91, %v90
    %v127 = vpack.c.bf16 %v93, %v92
    %v128 = vpack.c.bf16 %v95, %v94
    %v129 = vpack.c.bf16 %v97, %v96
    %v130 = vld [vmem:[%s1] sm:$0xf]
    %v131 = vld [vmem:[%s2] sm:$0x1]
    %v133 = vperm.slane %v131, 0
    %vm135 = vcmask 64512
    %v137 = vsel %vm135, %v98, 0
    %v140 = vsel %vm135, %v99, 0
    %v143 = vsel %vm135, %v100, 0
    %v146 = vsel %vm135, %v101, 0
    %v149 = vsel %vm135, %v102, 0
    %v152 = vsel %vm135, %v103, 0
    %v155 = vsel %vm135, %v104, 0
    %v158 = vsel %vm135, %v105, 0
    %v161 = vsel %vm135, %v106, 0
    %v164 = vsel %vm135, %v107, 0
    %v167 = vsel %vm135, %v108, 0
    %v170 = vsel %vm135, %v109, 0
    %v173 = vsel %vm135, %v110, 0
    %v176 = vsel %vm135, %v111, 0
    %v179 = vsel %vm135, %v112, 0
    %v182 = vsel %vm135, %v113, 0
    %v185 = vsel %vm135, %v114, 0
    %v188 = vsel %vm135, %v115, 0
    %v191 = vsel %vm135, %v116, 0
    %v194 = vsel %vm135, %v117, 0
    %v197 = vsel %vm135, %v118, 0
    %v200 = vsel %vm135, %v119, 0
    %v203 = vsel %vm135, %v120, 0
    %v206 = vsel %vm135, %v121, 0
    %v209 = vsel %vm135, %v122, 0
    %v212 = vsel %vm135, %v123, 0
    %v215 = vsel %vm135, %v124, 0
    %v218 = vsel %vm135, %v125, 0
    %v221 = vsel %vm135, %v126, 0
    %v224 = vsel %vm135, %v127, 0
    %v227 = vsel %vm135, %v128, 0
    %v230 = vsel %vm135, %v129, 0
    %vm232 = vcmask 1043456
    %v234 = vsel %vm232, %v130, 0
    %236 = vmatpush.bf16.msra.mxu0 0
    %237 = vmatpush.bf16.msra.mxu0 0
    %238 = vmatpush.bf16.msra.mxu0 0
    %239 = vmatpush.bf16.msra.mxu0 0
    %240 = vmatpush.bf16.msra.mxu0 0
    %241 = vmatpush.bf16.msra.mxu0 0
    %242 = vmatpush.bf16.msra.mxu0 0
    %243 = vmatpush.bf16.msra.mxu0 %v234
    %244 = vmatmul.bf16.gmra.mxu0 %v137
    %v245 = vpop.f32.mrf.mxu0
    %v246 = vadd.f32 %v133, %v245
    %v247 = vpop.f32.mrf.mxu0
    %v248 = vadd.f32 %v133, %v247
    %249 = vmatmul.bf16.gmra.mxu0 %v140
    %v250 = vpop.f32.mrf.mxu0
    %v251 = vadd.f32 %v133, %v250
    %v252 = vpop.f32.mrf.mxu0
    %v253 = vadd.f32 %v133, %v252
    %254 = vmatmul.bf16.gmra.mxu0 %v143
    %v255 = vpop.f32.mrf.mxu0
    %v256 = vadd.f32 %v133, %v255
    %v257 = vpop.f32.mrf.mxu0
    %v258 = vadd.f32 %v133, %v257
    %259 = vmatmul.bf16.gmra.mxu0 %v146
    %v260 = vpop.f32.mrf.mxu0
    %v261 = vadd.f32 %v133, %v260
    %v262 = vpop.f32.mrf.mxu0
    %v263 = vadd.f32 %v133, %v262
    %264 = vmatmul.bf16.gmra.mxu0 %v149
    %v265 = vpop.f32.mrf.mxu0
    %v266 = vadd.f32 %v133, %v265
    %v267 = vpop.f32.mrf.mxu0
    %v268 = vadd.f32 %v133, %v267
    %269 = vmatmul.bf16.gmra.mxu0 %v152
    %v270 = vpop.f32.mrf.mxu0
    %v271 = vadd.f32 %v133, %v270
    %v272 = vpop.f32.mrf.mxu0
    %v273 = vadd.f32 %v133, %v272
    %274 = vmatmul.bf16.gmra.mxu0 %v155
    %v275 = vpop.f32.mrf.mxu0
    %v276 = vadd.f32 %v133, %v275
    %v277 = vpop.f32.mrf.mxu0
    %v278 = vadd.f32 %v133, %v277
    %279 = vmatmul.bf16.gmra.mxu0 %v158
    %v280 = vpop.f32.mrf.mxu0
    %v281 = vadd.f32 %v133, %v280
    %v282 = vpop.f32.mrf.mxu0
    %v283 = vadd.f32 %v133, %v282
    %284 = vmatmul.bf16.gmra.mxu0 %v161
    %v285 = vpop.f32.mrf.mxu0
    %v286 = vadd.f32 %v133, %v285
    %v287 = vpop.f32.mrf.mxu0
    %v288 = vadd.f32 %v133, %v287
    %289 = vmatmul.bf16.gmra.mxu0 %v164
    %v290 = vpop.f32.mrf.mxu0
    %v291 = vadd.f32 %v133, %v290
    %v292 = vpop.f32.mrf.mxu0
    %v293 = vadd.f32 %v133, %v292
    %294 = vmatmul.bf16.gmra.mxu0 %v167
    %v295 = vpop.f32.mrf.mxu0
    %v296 = vadd.f32 %v133, %v295
    %v297 = vpop.f32.mrf.mxu0
    %v298 = vadd.f32 %v133, %v297
    %299 = vmatmul.bf16.gmra.mxu0 %v170
    %v300 = vpop.f32.mrf.mxu0
    %v301 = vadd.f32 %v133, %v300
    %v302 = vpop.f32.mrf.mxu0
    %v303 = vadd.f32 %v133, %v302
    %304 = vmatmul.bf16.gmra.mxu0 %v173
    %v305 = vpop.f32.mrf.mxu0
    %v306 = vadd.f32 %v133, %v305
    %v307 = vpop.f32.mrf.mxu0
    %v308 = vadd.f32 %v133, %v307
    %309 = vmatmul.bf16.gmra.mxu0 %v176
    %v310 = vpop.f32.mrf.mxu0
    %v311 = vadd.f32 %v133, %v310
    %v312 = vpop.f32.mrf.mxu0
    %v313 = vadd.f32 %v133, %v312
    %314 = vmatmul.bf16.gmra.mxu0 %v179
    %v315 = vpop.f32.mrf.mxu0
    %v316 = vadd.f32 %v133, %v315
    %v317 = vpop.f32.mrf.mxu0
    %v318 = vadd.f32 %v133, %v317
    %319 = vmatmul.bf16.gmra.mxu0 %v182
    %v320 = vpop.f32.mrf.mxu0
    %v321 = vadd.f32 %v133, %v320
    %v322 = vpop.f32.mrf.mxu0
    %v323 = vadd.f32 %v133, %v322
    %324 = vmatmul.bf16.gmra.mxu0 %v185
    %v325 = vpop.f32.mrf.mxu0
    %v326 = vadd.f32 %v133, %v325
    %v327 = vpop.f32.mrf.mxu0
    %v328 = vadd.f32 %v133, %v327
    %329 = vmatmul.bf16.gmra.mxu0 %v188
    %v330 = vpop.f32.mrf.mxu0
    %v331 = vadd.f32 %v133, %v330
    %v332 = vpop.f32.mrf.mxu0
    %v333 = vadd.f32 %v133, %v332
    %334 = vmatmul.bf16.gmra.mxu0 %v191
    %v335 = vpop.f32.mrf.mxu0
    %v336 = vadd.f32 %v133, %v335
    %v337 = vpop.f32.mrf.mxu0
    %v338 = vadd.f32 %v133, %v337
    %339 = vmatmul.bf16.gmra.mxu0 %v194
    %v340 = vpop.f32.mrf.mxu0
    %v341 = vadd.f32 %v133, %v340
    %v342 = vpop.f32.mrf.mxu0
    %v343 = vadd.f32 %v133, %v342
    %344 = vmatmul.bf16.gmra.mxu0 %v197
    %v345 = vpop.f32.mrf.mxu0
    %v346 = vadd.f32 %v133, %v345
    %v347 = vpop.f32.mrf.mxu0
    %v348 = vadd.f32 %v133, %v347
    %349 = vmatmul.bf16.gmra.mxu0 %v200
    %v350 = vpop.f32.mrf.mxu0
    %v351 = vadd.f32 %v133, %v350
    %v352 = vpop.f32.mrf.mxu0
    %v353 = vadd.f32 %v133, %v352
    %354 = vmatmul.bf16.gmra.mxu0 %v203
    %v355 = vpop.f32.mrf.mxu0
    %v356 = vadd.f32 %v133, %v355
    %v357 = vpop.f32.mrf.mxu0
    %v358 = vadd.f32 %v133, %v357
    %359 = vmatmul.bf16.gmra.mxu0 %v206
    %v360 = vpop.f32.mrf.mxu0
    %v361 = vadd.f32 %v133, %v360
    %v362 = vpop.f32.mrf.mxu0
    %v363 = vadd.f32 %v133, %v362
    %364 = vmatmul.bf16.gmra.mxu0 %v209
    %v365 = vpop.f32.mrf.mxu0
    %v366 = vadd.f32 %v133, %v365
    %v367 = vpop.f32.mrf.mxu0
    %v368 = vadd.f32 %v133, %v367
    %369 = vmatmul.bf16.gmra.mxu0 %v212
    %v370 = vpop.f32.mrf.mxu0
    %v371 = vadd.f32 %v133, %v370
    %v372 = vpop.f32.mrf.mxu0
    %v373 = vadd.f32 %v133, %v372
    %374 = vmatmul.bf16.gmra.mxu0 %v215
    %v375 = vpop.f32.mrf.mxu0
    %v376 = vadd.f32 %v133, %v375
    %v377 = vpop.f32.mrf.mxu0
    %v378 = vadd.f32 %v133, %v377
    %379 = vmatmul.bf16.gmra.mxu0 %v218
    %v380 = vpop.f32.mrf.mxu0
    %v381 = vadd.f32 %v133, %v380
    %v382 = vpop.f32.mrf.mxu0
    %v383 = vadd.f32 %v133, %v382
    %384 = vmatmul.bf16.gmra.mxu0 %v221
    %v385 = vpop.f32.mrf.mxu0
    %v386 = vadd.f32 %v133, %v385
    %v387 = vpop.f32.mrf.mxu0
    %v388 = vadd.f32 %v133, %v387
    %389 = vmatmul.bf16.gmra.mxu0 %v224
    %v390 = vpop.f32.mrf.mxu0
    %v391 = vadd.f32 %v133, %v390
    %v392 = vpop.f32.mrf.mxu0
    %v393 = vadd.f32 %v133, %v392
    %394 = vmatmul.bf16.gmra.mxu0 %v227
    %v395 = vpop.f32.mrf.mxu0
    %v396 = vadd.f32 %v133, %v395
    %v397 = vpop.f32.mrf.mxu0
    %v398 = vadd.f32 %v133, %v397
    %399 = vmatmul.bf16.gmra.mxu0 %v230
    %v400 = vpop.f32.mrf.mxu0
    %v401 = vadd.f32 %v133, %v400
    %v402 = vpop.f32.mrf.mxu0
    %v403 = vadd.f32 %v133, %v402
    %404 = vdwg.mxu0
    %v405 = vmax.f32 %v246, 0.0
    %v406 = vmax.f32 %v248, 0.0
    %v407 = vmax.f32 %v251, 0.0
    %v408 = vmax.f32 %v253, 0.0
    %v409 = vmax.f32 %v256, 0.0
    %v410 = vmax.f32 %v258, 0.0
    %v411 = vmax.f32 %v261, 0.0
    %v412 = vmax.f32 %v263, 0.0
    %v413 = vmax.f32 %v266, 0.0
    %v414 = vmax.f32 %v268, 0.0
    %v415 = vmax.f32 %v271, 0.0
    %v416 = vmax.f32 %v273, 0.0
    %v417 = vmax.f32 %v276, 0.0
    %v418 = vmax.f32 %v278, 0.0
    %v419 = vmax.f32 %v281, 0.0
    %v420 = vmax.f32 %v283, 0.0
    %v421 = vmax.f32 %v286, 0.0
    %v422 = vmax.f32 %v288, 0.0
    %v423 = vmax.f32 %v291, 0.0
    %v424 = vmax.f32 %v293, 0.0
    %v425 = vmax.f32 %v296, 0.0
    %v426 = vmax.f32 %v298, 0.0
    %v427 = vmax.f32 %v301, 0.0
    %v428 = vmax.f32 %v303, 0.0
    %v429 = vmax.f32 %v306, 0.0
    %v430 = vmax.f32 %v308, 0.0
    %v431 = vmax.f32 %v311, 0.0
    %v432 = vmax.f32 %v313, 0.0
    %v433 = vmax.f32 %v316, 0.0
    %v434 = vmax.f32 %v318, 0.0
    %v435 = vmax.f32 %v321, 0.0
    %v436 = vmax.f32 %v323, 0.0
    %v437 = vmax.f32 %v326, 0.0
    %v438 = vmax.f32 %v328, 0.0
    %v439 = vmax.f32 %v331, 0.0
    %v440 = vmax.f32 %v333, 0.0
    %v441 = vmax.f32 %v336, 0.0
    %v442 = vmax.f32 %v338, 0.0
    %v443 = vmax.f32 %v341, 0.0
    %v444 = vmax.f32 %v343, 0.0
    %v445 = vmax.f32 %v346, 0.0
    %v446 = vmax.f32 %v348, 0.0
    %v447 = vmax.f32 %v351, 0.0
    %v448 = vmax.f32 %v353, 0.0
    %v449 = vmax.f32 %v356, 0.0
    %v450 = vmax.f32 %v358, 0.0
    %v451 = vmax.f32 %v361, 0.0
    %v452 = vmax.f32 %v363, 0.0
    %v453 = vmax.f32 %v366, 0.0
    %v454 = vmax.f32 %v368, 0.0
    %v455 = vmax.f32 %v371, 0.0
    %v456 = vmax.f32 %v373, 0.0
    %v457 = vmax.f32 %v376, 0.0
    %v458 = vmax.f32 %v378, 0.0
    %v459 = vmax.f32 %v381, 0.0
    %v460 = vmax.f32 %v383, 0.0
    %v461 = vmax.f32 %v386, 0.0
    %v462 = vmax.f32 %v388, 0.0
    %v463 = vmax.f32 %v391, 0.0
    %v464 = vmax.f32 %v393, 0.0
    %v465 = vmax.f32 %v396, 0.0
    %v466 = vmax.f32 %v398, 0.0
    %v467 = vmax.f32 %v401, 0.0
    %v468 = vmax.f32 %v403, 0.0
    %v469 = vpack.c.bf16 %v406, %v405
    %v470 = vpack.c.bf16 %v408, %v407
    %v471 = vpack.c.bf16 %v410, %v409
    %v472 = vpack.c.bf16 %v412, %v411
    %v473 = vpack.c.bf16 %v414, %v413
    %v474 = vpack.c.bf16 %v416, %v415
    %v475 = vpack.c.bf16 %v418, %v417
    %v476 = vpack.c.bf16 %v420, %v419
    %v477 = vpack.c.bf16 %v422, %v421
    %v478 = vpack.c.bf16 %v424, %v423
    %v479 = vpack.c.bf16 %v426, %v425
    %v480 = vpack.c.bf16 %v428, %v427
    %v481 = vpack.c.bf16 %v430, %v429
    %v482 = vpack.c.bf16 %v432, %v431
    %v483 = vpack.c.bf16 %v434, %v433
    %v484 = vpack.c.bf16 %v436, %v435
    %v485 = vpack.c.bf16 %v438, %v437
    %v486 = vpack.c.bf16 %v440, %v439
    %v487 = vpack.c.bf16 %v442, %v441
    %v488 = vpack.c.bf16 %v444, %v443
    %v489 = vpack.c.bf16 %v446, %v445
    %v490 = vpack.c.bf16 %v448, %v447
    %v491 = vpack.c.bf16 %v450, %v449
    %v492 = vpack.c.bf16 %v452, %v451
    %v493 = vpack.c.bf16 %v454, %v453
    %v494 = vpack.c.bf16 %v456, %v455
    %v495 = vpack.c.bf16 %v458, %v457
    %v496 = vpack.c.bf16 %v460, %v459
    %v497 = vpack.c.bf16 %v462, %v461
    %v498 = vpack.c.bf16 %v464, %v463
    %v499 = vpack.c.bf16 %v466, %v465
    %v500 = vpack.c.bf16 %v468, %v467
    %v501 = vld [vmem:[%s3] sm:$0xf]
    %v502 = vld [vmem:[%s3 + $0x4] sm:$0xf]
    %v503 = vld [vmem:[%s3 + $0x8] sm:$0xf]
    %v504 = vld [vmem:[%s3 + $0xc] sm:$0xf]
    %v505 = vld [vmem:[%s3 + $0x10] sm:$0xf]
    %v506 = vld [vmem:[%s3 + $0x14] sm:$0xf]
    %v507 = vld [vmem:[%s3 + $0x18] sm:$0xf]
    %v508 = vld [vmem:[%s3 + $0x1c] sm:$0xf]
    %v509 = vld [vmem:[%s3 + $0x20] sm:$0xf]
    %v510 = vld [vmem:[%s3 + $0x24] sm:$0xf]
    %v511 = vld [vmem:[%s3 + $0x28] sm:$0xf]
    %v512 = vld [vmem:[%s3 + $0x2c] sm:$0xf]
    %v513 = vld [vmem:[%s3 + $0x30] sm:$0xf]
    %v514 = vld [vmem:[%s3 + $0x34] sm:$0xf]
    %v515 = vld [vmem:[%s3 + $0x38] sm:$0xf]
    %v516 = vld [vmem:[%s3 + $0x3c] sm:$0xf]
    %v517 = vld [vmem:[%s4] sm:$0x1]
    %v519 = vperm.slane %v517, 0
    %v537 = vunpack.c.l.b16 %v501
    %v538 = vunpack.c.l.b16 %v502
    %v539 = vunpack.c.l.b16 %v503
    %v540 = vunpack.c.l.b16 %v504
    %v541 = vunpack.c.l.b16 %v505
    %v542 = vunpack.c.l.b16 %v506
    %v543 = vunpack.c.l.b16 %v507
    %v544 = vunpack.c.l.b16 %v508
    %v545 = vunpack.c.l.b16 %v509
    %v546 = vunpack.c.l.b16 %v510
    %v547 = vunpack.c.l.b16 %v511
    %v548 = vunpack.c.l.b16 %v512
    %v549 = vunpack.c.l.b16 %v513
    %v550 = vunpack.c.l.b16 %v514
    %v551 = vunpack.c.l.b16 %v515
    %v552 = vunpack.c.l.b16 %v516
    %v553 = vpack.c.b16 %v538, %v537
    %v554 = vpack.c.b16 %v540, %v539
    %v555 = vpack.c.b16 %v542, %v541
    %v556 = vpack.c.b16 %v544, %v543
    %v557 = vpack.c.b16 %v546, %v545
    %v558 = vpack.c.b16 %v548, %v547
    %v559 = vpack.c.b16 %v550, %v549
    %v560 = vpack.c.b16 %v552, %v551
    %569 = vmatpush.bf16.msra.mxu0 %v560
    %570 = vmatpush.bf16.msra.mxu0 %v559
    %571 = vmatpush.bf16.msra.mxu0 %v558
    %572 = vmatpush.bf16.msra.mxu0 %v557
    %573 = vmatpush.bf16.msra.mxu0 %v556
    %574 = vmatpush.bf16.msra.mxu0 %v555
    %575 = vmatpush.bf16.msra.mxu0 %v554
    %576 = vmatpush.bf16.msra.mxu0 %v553
    %577 = vmatmul.bf16.gmra.mxu0 %v469
    %v578 = vpop.f32.mrf.mxu0
    %v579 = vadd.f32 %v519, %v578
    %v580 = vpop.f32.mrf.mxu0
    %v581 = vadd.f32 %v519, %v580
    %582 = vmatmul.bf16.gmra.mxu0 %v470
    %v583 = vpop.f32.mrf.mxu0
    %v584 = vadd.f32 %v519, %v583
    %v585 = vpop.f32.mrf.mxu0
    %v586 = vadd.f32 %v519, %v585
    %587 = vmatmul.bf16.gmra.mxu0 %v471
    %v588 = vpop.f32.mrf.mxu0
    %v589 = vadd.f32 %v519, %v588
    %v590 = vpop.f32.mrf.mxu0
    %v591 = vadd.f32 %v519, %v590
    %592 = vmatmul.bf16.gmra.mxu0 %v472
    %v593 = vpop.f32.mrf.mxu0
    %v594 = vadd.f32 %v519, %v593
    %v595 = vpop.f32.mrf.mxu0
    %v596 = vadd.f32 %v519, %v595
    %597 = vmatmul.bf16.gmra.mxu0 %v473
    %v598 = vpop.f32.mrf.mxu0
    %v599 = vadd.f32 %v519, %v598
    %v600 = vpop.f32.mrf.mxu0
    %v601 = vadd.f32 %v519, %v600
    %602 = vmatmul.bf16.gmra.mxu0 %v474
    %v603 = vpop.f32.mrf.mxu0
    %v604 = vadd.f32 %v519, %v603
    %v605 = vpop.f32.mrf.mxu0
    %v606 = vadd.f32 %v519, %v605
    %607 = vmatmul.bf16.gmra.mxu0 %v475
    %v608 = vpop.f32.mrf.mxu0
    %v609 = vadd.f32 %v519, %v608
    %v610 = vpop.f32.mrf.mxu0
    %v611 = vadd.f32 %v519, %v610
    %612 = vmatmul.bf16.gmra.mxu0 %v476
    %v613 = vpop.f32.mrf.mxu0
    %v614 = vadd.f32 %v519, %v613
    %v615 = vpop.f32.mrf.mxu0
    %v616 = vadd.f32 %v519, %v615
    %617 = vmatmul.bf16.gmra.mxu0 %v477
    %v618 = vpop.f32.mrf.mxu0
    %v619 = vadd.f32 %v519, %v618
    %v620 = vpop.f32.mrf.mxu0
    %v621 = vadd.f32 %v519, %v620
    %622 = vmatmul.bf16.gmra.mxu0 %v478
    %v623 = vpop.f32.mrf.mxu0
    %v624 = vadd.f32 %v519, %v623
    %v625 = vpop.f32.mrf.mxu0
    %v626 = vadd.f32 %v519, %v625
    %627 = vmatmul.bf16.gmra.mxu0 %v479
    %v628 = vpop.f32.mrf.mxu0
    %v629 = vadd.f32 %v519, %v628
    %v630 = vpop.f32.mrf.mxu0
    %v631 = vadd.f32 %v519, %v630
    %632 = vmatmul.bf16.gmra.mxu0 %v480
    %v633 = vpop.f32.mrf.mxu0
    %v634 = vadd.f32 %v519, %v633
    %v635 = vpop.f32.mrf.mxu0
    %v636 = vadd.f32 %v519, %v635
    %637 = vmatmul.bf16.gmra.mxu0 %v481
    %v638 = vpop.f32.mrf.mxu0
    %v639 = vadd.f32 %v519, %v638
    %v640 = vpop.f32.mrf.mxu0
    %v641 = vadd.f32 %v519, %v640
    %642 = vmatmul.bf16.gmra.mxu0 %v482
    %v643 = vpop.f32.mrf.mxu0
    %v644 = vadd.f32 %v519, %v643
    %v645 = vpop.f32.mrf.mxu0
    %v646 = vadd.f32 %v519, %v645
    %647 = vmatmul.bf16.gmra.mxu0 %v483
    %v648 = vpop.f32.mrf.mxu0
    %v649 = vadd.f32 %v519, %v648
    %v650 = vpop.f32.mrf.mxu0
    %v651 = vadd.f32 %v519, %v650
    %652 = vmatmul.bf16.gmra.mxu0 %v484
    %v653 = vpop.f32.mrf.mxu0
    %v654 = vadd.f32 %v519, %v653
    %v655 = vpop.f32.mrf.mxu0
    %v656 = vadd.f32 %v519, %v655
    %657 = vmatmul.bf16.gmra.mxu0 %v485
    %v658 = vpop.f32.mrf.mxu0
    %v659 = vadd.f32 %v519, %v658
    %v660 = vpop.f32.mrf.mxu0
    %v661 = vadd.f32 %v519, %v660
    %662 = vmatmul.bf16.gmra.mxu0 %v486
    %v663 = vpop.f32.mrf.mxu0
    %v664 = vadd.f32 %v519, %v663
    %v665 = vpop.f32.mrf.mxu0
    %v666 = vadd.f32 %v519, %v665
    %667 = vmatmul.bf16.gmra.mxu0 %v487
    %v668 = vpop.f32.mrf.mxu0
    %v669 = vadd.f32 %v519, %v668
    %v670 = vpop.f32.mrf.mxu0
    %v671 = vadd.f32 %v519, %v670
    %672 = vmatmul.bf16.gmra.mxu0 %v488
    %v673 = vpop.f32.mrf.mxu0
    %v674 = vadd.f32 %v519, %v673
    %v675 = vpop.f32.mrf.mxu0
    %v676 = vadd.f32 %v519, %v675
    %677 = vmatmul.bf16.gmra.mxu0 %v489
    %v678 = vpop.f32.mrf.mxu0
    %v679 = vadd.f32 %v519, %v678
    %v680 = vpop.f32.mrf.mxu0
    %v681 = vadd.f32 %v519, %v680
    %682 = vmatmul.bf16.gmra.mxu0 %v490
    %v683 = vpop.f32.mrf.mxu0
    %v684 = vadd.f32 %v519, %v683
    %v685 = vpop.f32.mrf.mxu0
    %v686 = vadd.f32 %v519, %v685
    %687 = vmatmul.bf16.gmra.mxu0 %v491
    %v688 = vpop.f32.mrf.mxu0
    %v689 = vadd.f32 %v519, %v688
    %v690 = vpop.f32.mrf.mxu0
    %v691 = vadd.f32 %v519, %v690
    %692 = vmatmul.bf16.gmra.mxu0 %v492
    %v693 = vpop.f32.mrf.mxu0
    %v694 = vadd.f32 %v519, %v693
    %v695 = vpop.f32.mrf.mxu0
    %v696 = vadd.f32 %v519, %v695
    %697 = vmatmul.bf16.gmra.mxu0 %v493
    %v698 = vpop.f32.mrf.mxu0
    %v699 = vadd.f32 %v519, %v698
    %v700 = vpop.f32.mrf.mxu0
    %v701 = vadd.f32 %v519, %v700
    %702 = vmatmul.bf16.gmra.mxu0 %v494
    %v703 = vpop.f32.mrf.mxu0
    %v704 = vadd.f32 %v519, %v703
    %v705 = vpop.f32.mrf.mxu0
    %v706 = vadd.f32 %v519, %v705
    %707 = vmatmul.bf16.gmra.mxu0 %v495
    %v708 = vpop.f32.mrf.mxu0
    %v709 = vadd.f32 %v519, %v708
    %v710 = vpop.f32.mrf.mxu0
    %v711 = vadd.f32 %v519, %v710
    %712 = vmatmul.bf16.gmra.mxu0 %v496
    %v713 = vpop.f32.mrf.mxu0
    %v714 = vadd.f32 %v519, %v713
    %v715 = vpop.f32.mrf.mxu0
    %v716 = vadd.f32 %v519, %v715
    %717 = vmatmul.bf16.gmra.mxu0 %v497
    %v718 = vpop.f32.mrf.mxu0
    %v719 = vadd.f32 %v519, %v718
    %v720 = vpop.f32.mrf.mxu0
    %v721 = vadd.f32 %v519, %v720
    %722 = vmatmul.bf16.gmra.mxu0 %v498
    %v723 = vpop.f32.mrf.mxu0
    %v724 = vadd.f32 %v519, %v723
    %v725 = vpop.f32.mrf.mxu0
    %v726 = vadd.f32 %v519, %v725
    %727 = vmatmul.bf16.gmra.mxu0 %v499
    %v728 = vpop.f32.mrf.mxu0
    %v729 = vadd.f32 %v519, %v728
    %v730 = vpop.f32.mrf.mxu0
    %v731 = vadd.f32 %v519, %v730
    %732 = vmatmul.bf16.gmra.mxu0 %v500
    %v733 = vpop.f32.mrf.mxu0
    %v734 = vadd.f32 %v519, %v733
    %v735 = vpop.f32.mrf.mxu0
    %v736 = vadd.f32 %v519, %v735
    %737 = vdwg.mxu0
    %v738 = vmax.f32 %v579, 0.0
    %v739 = vmax.f32 %v581, 0.0
    %v740 = vmax.f32 %v584, 0.0
    %v741 = vmax.f32 %v586, 0.0
    %v742 = vmax.f32 %v589, 0.0
    %v743 = vmax.f32 %v591, 0.0
    %v744 = vmax.f32 %v594, 0.0
    %v745 = vmax.f32 %v596, 0.0
    %v746 = vmax.f32 %v599, 0.0
    %v747 = vmax.f32 %v601, 0.0
    %v748 = vmax.f32 %v604, 0.0
    %v749 = vmax.f32 %v606, 0.0
    %v750 = vmax.f32 %v609, 0.0
    %v751 = vmax.f32 %v611, 0.0
    %v752 = vmax.f32 %v614, 0.0
    %v753 = vmax.f32 %v616, 0.0
    %v754 = vmax.f32 %v619, 0.0
    %v755 = vmax.f32 %v621, 0.0
    %v756 = vmax.f32 %v624, 0.0
    %v757 = vmax.f32 %v626, 0.0
    %v758 = vmax.f32 %v629, 0.0
    %v759 = vmax.f32 %v631, 0.0
    %v760 = vmax.f32 %v634, 0.0
    %v761 = vmax.f32 %v636, 0.0
    %v762 = vmax.f32 %v639, 0.0
    %v763 = vmax.f32 %v641, 0.0
    %v764 = vmax.f32 %v644, 0.0
    %v765 = vmax.f32 %v646, 0.0
    %v766 = vmax.f32 %v649, 0.0
    %v767 = vmax.f32 %v651, 0.0
    %v768 = vmax.f32 %v654, 0.0
    %v769 = vmax.f32 %v656, 0.0
    %v770 = vmax.f32 %v659, 0.0
    %v771 = vmax.f32 %v661, 0.0
    %v772 = vmax.f32 %v664, 0.0
    %v773 = vmax.f32 %v666, 0.0
    %v774 = vmax.f32 %v669, 0.0
    %v775 = vmax.f32 %v671, 0.0
    %v776 = vmax.f32 %v674, 0.0
    %v777 = vmax.f32 %v676, 0.0
    %v778 = vmax.f32 %v679, 0.0
    %v779 = vmax.f32 %v681, 0.0
    %v780 = vmax.f32 %v684, 0.0
    %v781 = vmax.f32 %v686, 0.0
    %v782 = vmax.f32 %v689, 0.0
    %v783 = vmax.f32 %v691, 0.0
    %v784 = vmax.f32 %v694, 0.0
    %v785 = vmax.f32 %v696, 0.0
    %v786 = vmax.f32 %v699, 0.0
    %v787 = vmax.f32 %v701, 0.0
    %v788 = vmax.f32 %v704, 0.0
    %v789 = vmax.f32 %v706, 0.0
    %v790 = vmax.f32 %v709, 0.0
    %v791 = vmax.f32 %v711, 0.0
    %v792 = vmax.f32 %v714, 0.0
    %v793 = vmax.f32 %v716, 0.0
    %v794 = vmax.f32 %v719, 0.0
    %v795 = vmax.f32 %v721, 0.0
    %v796 = vmax.f32 %v724, 0.0
    %v797 = vmax.f32 %v726, 0.0
    %v798 = vmax.f32 %v729, 0.0
    %v799 = vmax.f32 %v731, 0.0
    %v800 = vmax.f32 %v734, 0.0
    %v801 = vmax.f32 %v736, 0.0
    %v802 = vpack.c.bf16 %v739, %v738
    %v803 = vpack.c.bf16 %v741, %v740
    %v804 = vpack.c.bf16 %v743, %v742
    %v805 = vpack.c.bf16 %v745, %v744
    %v806 = vpack.c.bf16 %v747, %v746
    %v807 = vpack.c.bf16 %v749, %v748
    %v808 = vpack.c.bf16 %v751, %v750
    %v809 = vpack.c.bf16 %v753, %v752
    %v810 = vpack.c.bf16 %v755, %v754
    %v811 = vpack.c.bf16 %v757, %v756
    %v812 = vpack.c.bf16 %v759, %v758
    %v813 = vpack.c.bf16 %v761, %v760
    %v814 = vpack.c.bf16 %v763, %v762
    %v815 = vpack.c.bf16 %v765, %v764
    %v816 = vpack.c.bf16 %v767, %v766
    %v817 = vpack.c.bf16 %v769, %v768
    %v818 = vpack.c.bf16 %v771, %v770
    %v819 = vpack.c.bf16 %v773, %v772
    %v820 = vpack.c.bf16 %v775, %v774
    %v821 = vpack.c.bf16 %v777, %v776
    %v822 = vpack.c.bf16 %v779, %v778
    %v823 = vpack.c.bf16 %v781, %v780
    %v824 = vpack.c.bf16 %v783, %v782
    %v825 = vpack.c.bf16 %v785, %v784
    %v826 = vpack.c.bf16 %v787, %v786
    %v827 = vpack.c.bf16 %v789, %v788
    %v828 = vpack.c.bf16 %v791, %v790
    %v829 = vpack.c.bf16 %v793, %v792
    %v830 = vpack.c.bf16 %v795, %v794
    %v831 = vpack.c.bf16 %v797, %v796
    %v832 = vpack.c.bf16 %v799, %v798
    %v833 = vpack.c.bf16 %v801, %v800
    %v834 = vld [vmem:[%s5] sm:$0xf]
    %v835 = vld [vmem:[%s5 + $0x4] sm:$0xf]
    %v836 = vld [vmem:[%s5 + $0x8] sm:$0xf]
    %v837 = vld [vmem:[%s5 + $0xc] sm:$0xf]
    %v838 = vld [vmem:[%s5 + $0x10] sm:$0xf]
    %v839 = vld [vmem:[%s5 + $0x14] sm:$0xf]
    %v840 = vld [vmem:[%s5 + $0x18] sm:$0xf]
    %v841 = vld [vmem:[%s5 + $0x1c] sm:$0xf]
    %v842 = vld [vmem:[%s6] sm:$0x1]
    %v844 = vperm.slane %v842, 0
    %v854 = vunpack.c.l.b16 %v834
    %v855 = vunpack.c.l.b16 %v835
    %v856 = vunpack.c.l.b16 %v836
    %v857 = vunpack.c.l.b16 %v837
    %v858 = vunpack.c.l.b16 %v838
    %v859 = vunpack.c.l.b16 %v839
    %v860 = vunpack.c.l.b16 %v840
    %v861 = vunpack.c.l.b16 %v841
    %v862 = vpack.c.b16 %v855, %v854
    %v863 = vpack.c.b16 %v857, %v856
    %v864 = vpack.c.b16 %v859, %v858
    %v865 = vpack.c.b16 %v861, %v860
    %vm870 = vcmask 523264
    %v872 = vsel %vm870, %v802, 0
    %v875 = vsel %vm870, %v803, 0
    %v878 = vsel %vm870, %v804, 0
    %v881 = vsel %vm870, %v805, 0
    %v884 = vsel %vm870, %v806, 0
    %v887 = vsel %vm870, %v807, 0
    %v890 = vsel %vm870, %v808, 0
    %v893 = vsel %vm870, %v809, 0
    %v896 = vsel %vm870, %v810, 0
    %v899 = vsel %vm870, %v811, 0
    %v902 = vsel %vm870, %v812, 0
    %v905 = vsel %vm870, %v813, 0
    %v908 = vsel %vm870, %v814, 0
    %v911 = vsel %vm870, %v815, 0
    %v914 = vsel %vm870, %v816, 0
    %v917 = vsel %vm870, %v817, 0
    %v920 = vsel %vm870, %v818, 0
    %v923 = vsel %vm870, %v819, 0
    %v926 = vsel %vm870, %v820, 0
    %v929 = vsel %vm870, %v821, 0
    %v932 = vsel %vm870, %v822, 0
    %v935 = vsel %vm870, %v823, 0
    %v938 = vsel %vm870, %v824, 0
    %v941 = vsel %vm870, %v825, 0
    %v944 = vsel %vm870, %v826, 0
    %v947 = vsel %vm870, %v827, 0
    %v950 = vsel %vm870, %v828, 0
    %v953 = vsel %vm870, %v829, 0
    %v956 = vsel %vm870, %v830, 0
    %v959 = vsel %vm870, %v831, 0
    %v962 = vsel %vm870, %v832, 0
    %v965 = vsel %vm870, %v833, 0
    %967 = vmatpush.bf16.msra.mxu0 0
    %968 = vmatpush.bf16.msra.mxu0 0
    %969 = vmatpush.bf16.msra.mxu0 0
    %970 = vmatpush.bf16.msra.mxu0 0
    %971 = vmatpush.bf16.msra.mxu0 %v865
    %972 = vmatpush.bf16.msra.mxu0 %v864
    %973 = vmatpush.bf16.msra.mxu0 %v863
    %974 = vmatpush.bf16.msra.mxu0 %v862
    %975 = vmatmul.bf16.gmra.mxu0 %v872
    %v976 = vpop.f32.mrf.mxu0
    %v977 = vadd.f32 %v844, %v976
    %v978 = vpop.f32.mrf.mxu0
    %v979 = vadd.f32 %v844, %v978
    %980 = vmatmul.bf16.gmra.mxu0 %v875
    %v981 = vpop.f32.mrf.mxu0
    %v982 = vadd.f32 %v844, %v981
    %v983 = vpop.f32.mrf.mxu0
    %v984 = vadd.f32 %v844, %v983
    %985 = vmatmul.bf16.gmra.mxu0 %v878
    %v986 = vpop.f32.mrf.mxu0
    %v987 = vadd.f32 %v844, %v986
    %v988 = vpop.f32.mrf.mxu0
    %v989 = vadd.f32 %v844, %v988
    %990 = vmatmul.bf16.gmra.mxu0 %v881
    %v991 = vpop.f32.mrf.mxu0
    %v992 = vadd.f32 %v844, %v991
    %v993 = vpop.f32.mrf.mxu0
    %v994 = vadd.f32 %v844, %v993
    %995 = vmatmul.bf16.gmra.mxu0 %v884
    %v996 = vpop.f32.mrf.mxu0
    %v997 = vadd.f32 %v844, %v996
    %v998 = vpop.f32.mrf.mxu0
    %v999 = vadd.f32 %v844, %v998
    %1000 = vmatmul.bf16.gmra.mxu0 %v887
    %v1001 = vpop.f32.mrf.mxu0
    %v1002 = vadd.f32 %v844, %v1001
    %v1003 = vpop.f32.mrf.mxu0
    %v1004 = vadd.f32 %v844, %v1003
    %1005 = vmatmul.bf16.gmra.mxu0 %v890
    %v1006 = vpop.f32.mrf.mxu0
    %v1007 = vadd.f32 %v844, %v1006
    %v1008 = vpop.f32.mrf.mxu0
    %v1009 = vadd.f32 %v844, %v1008
    %1010 = vmatmul.bf16.gmra.mxu0 %v893
    %v1011 = vpop.f32.mrf.mxu0
    %v1012 = vadd.f32 %v844, %v1011
    %v1013 = vpop.f32.mrf.mxu0
    %v1014 = vadd.f32 %v844, %v1013
    %1015 = vmatmul.bf16.gmra.mxu0 %v896
    %v1016 = vpop.f32.mrf.mxu0
    %v1017 = vadd.f32 %v844, %v1016
    %v1018 = vpop.f32.mrf.mxu0
    %v1019 = vadd.f32 %v844, %v1018
    %1020 = vmatmul.bf16.gmra.mxu0 %v899
    %v1021 = vpop.f32.mrf.mxu0
    %v1022 = vadd.f32 %v844, %v1021
    %v1023 = vpop.f32.mrf.mxu0
    %v1024 = vadd.f32 %v844, %v1023
    %1025 = vmatmul.bf16.gmra.mxu0 %v902
    %v1026 = vpop.f32.mrf.mxu0
    %v1027 = vadd.f32 %v844, %v1026
    %v1028 = vpop.f32.mrf.mxu0
    %v1029 = vadd.f32 %v844, %v1028
    %1030 = vmatmul.bf16.gmra.mxu0 %v905
    %v1031 = vpop.f32.mrf.mxu0
    %v1032 = vadd.f32 %v844, %v1031
    %v1033 = vpop.f32.mrf.mxu0
    %v1034 = vadd.f32 %v844, %v1033
    %1035 = vmatmul.bf16.gmra.mxu0 %v908
    %v1036 = vpop.f32.mrf.mxu0
    %v1037 = vadd.f32 %v844, %v1036
    %v1038 = vpop.f32.mrf.mxu0
    %v1039 = vadd.f32 %v844, %v1038
    %1040 = vmatmul.bf16.gmra.mxu0 %v911
    %v1041 = vpop.f32.mrf.mxu0
    %v1042 = vadd.f32 %v844, %v1041
    %v1043 = vpop.f32.mrf.mxu0
    %v1044 = vadd.f32 %v844, %v1043
    %1045 = vmatmul.bf16.gmra.mxu0 %v914
    %v1046 = vpop.f32.mrf.mxu0
    %v1047 = vadd.f32 %v844, %v1046
    %v1048 = vpop.f32.mrf.mxu0
    %v1049 = vadd.f32 %v844, %v1048
    %1050 = vmatmul.bf16.gmra.mxu0 %v917
    %v1051 = vpop.f32.mrf.mxu0
    %v1052 = vadd.f32 %v844, %v1051
    %v1053 = vpop.f32.mrf.mxu0
    %v1054 = vadd.f32 %v844, %v1053
    %1055 = vmatmul.bf16.gmra.mxu0 %v920
    %v1056 = vpop.f32.mrf.mxu0
    %v1057 = vadd.f32 %v844, %v1056
    %v1058 = vpop.f32.mrf.mxu0
    %v1059 = vadd.f32 %v844, %v1058
    %1060 = vmatmul.bf16.gmra.mxu0 %v923
    %v1061 = vpop.f32.mrf.mxu0
    %v1062 = vadd.f32 %v844, %v1061
    %v1063 = vpop.f32.mrf.mxu0
    %v1064 = vadd.f32 %v844, %v1063
    %1065 = vmatmul.bf16.gmra.mxu0 %v926
    %v1066 = vpop.f32.mrf.mxu0
    %v1067 = vadd.f32 %v844, %v1066
    %v1068 = vpop.f32.mrf.mxu0
    %v1069 = vadd.f32 %v844, %v1068
    %1070 = vmatmul.bf16.gmra.mxu0 %v929
    %v1071 = vpop.f32.mrf.mxu0
    %v1072 = vadd.f32 %v844, %v1071
    %v1073 = vpop.f32.mrf.mxu0
    %v1074 = vadd.f32 %v844, %v1073
    %1075 = vmatmul.bf16.gmra.mxu0 %v932
    %v1076 = vpop.f32.mrf.mxu0
    %v1077 = vadd.f32 %v844, %v1076
    %v1078 = vpop.f32.mrf.mxu0
    %v1079 = vadd.f32 %v844, %v1078
    %1080 = vmatmul.bf16.gmra.mxu0 %v935
    %v1081 = vpop.f32.mrf.mxu0
    %v1082 = vadd.f32 %v844, %v1081
    %v1083 = vpop.f32.mrf.mxu0
    %v1084 = vadd.f32 %v844, %v1083
    %1085 = vmatmul.bf16.gmra.mxu0 %v938
    %v1086 = vpop.f32.mrf.mxu0
    %v1087 = vadd.f32 %v844, %v1086
    %v1088 = vpop.f32.mrf.mxu0
    %v1089 = vadd.f32 %v844, %v1088
    %1090 = vmatmul.bf16.gmra.mxu0 %v941
    %v1091 = vpop.f32.mrf.mxu0
    %v1092 = vadd.f32 %v844, %v1091
    %v1093 = vpop.f32.mrf.mxu0
    %v1094 = vadd.f32 %v844, %v1093
    %1095 = vmatmul.bf16.gmra.mxu0 %v944
    %v1096 = vpop.f32.mrf.mxu0
    %v1097 = vadd.f32 %v844, %v1096
    %v1098 = vpop.f32.mrf.mxu0
    %v1099 = vadd.f32 %v844, %v1098
    %1100 = vmatmul.bf16.gmra.mxu0 %v947
    %v1101 = vpop.f32.mrf.mxu0
    %v1102 = vadd.f32 %v844, %v1101
    %v1103 = vpop.f32.mrf.mxu0
    %v1104 = vadd.f32 %v844, %v1103
    %1105 = vmatmul.bf16.gmra.mxu0 %v950
    %v1106 = vpop.f32.mrf.mxu0
    %v1107 = vadd.f32 %v844, %v1106
    %v1108 = vpop.f32.mrf.mxu0
    %v1109 = vadd.f32 %v844, %v1108
    %1110 = vmatmul.bf16.gmra.mxu0 %v953
    %v1111 = vpop.f32.mrf.mxu0
    %v1112 = vadd.f32 %v844, %v1111
    %v1113 = vpop.f32.mrf.mxu0
    %v1114 = vadd.f32 %v844, %v1113
    %1115 = vmatmul.bf16.gmra.mxu0 %v956
    %v1116 = vpop.f32.mrf.mxu0
    %v1117 = vadd.f32 %v844, %v1116
    %v1118 = vpop.f32.mrf.mxu0
    %v1119 = vadd.f32 %v844, %v1118
    %1120 = vmatmul.bf16.gmra.mxu0 %v959
    %v1121 = vpop.f32.mrf.mxu0
    %v1122 = vadd.f32 %v844, %v1121
    %v1123 = vpop.f32.mrf.mxu0
    %v1124 = vadd.f32 %v844, %v1123
    %1125 = vmatmul.bf16.gmra.mxu0 %v962
    %v1126 = vpop.f32.mrf.mxu0
    %v1127 = vadd.f32 %v844, %v1126
    %v1128 = vpop.f32.mrf.mxu0
    %v1129 = vadd.f32 %v844, %v1128
    %1130 = vmatmul.bf16.gmra.mxu0 %v965
    %v1131 = vpop.f32.mrf.mxu0
    %v1132 = vadd.f32 %v844, %v1131
    %v1133 = vpop.f32.mrf.mxu0
    %v1134 = vadd.f32 %v844, %v1133
    %1135 = vdwg.mxu0
    %v1136 = vmax.f32 %v977, 0.0
    %v1137 = vmax.f32 %v979, 0.0
    %v1138 = vmax.f32 %v982, 0.0
    %v1139 = vmax.f32 %v984, 0.0
    %v1140 = vmax.f32 %v987, 0.0
    %v1141 = vmax.f32 %v989, 0.0
    %v1142 = vmax.f32 %v992, 0.0
    %v1143 = vmax.f32 %v994, 0.0
    %v1144 = vmax.f32 %v997, 0.0
    %v1145 = vmax.f32 %v999, 0.0
    %v1146 = vmax.f32 %v1002, 0.0
    %v1147 = vmax.f32 %v1004, 0.0
    %v1148 = vmax.f32 %v1007, 0.0
    %v1149 = vmax.f32 %v1009, 0.0
    %v1150 = vmax.f32 %v1012, 0.0
    %v1151 = vmax.f32 %v1014, 0.0
    %v1152 = vmax.f32 %v1017, 0.0
    %v1153 = vmax.f32 %v1019, 0.0
    %v1154 = vmax.f32 %v1022, 0.0
    %v1155 = vmax.f32 %v1024, 0.0
    %v1156 = vmax.f32 %v1027, 0.0
    %v1157 = vmax.f32 %v1029, 0.0
    %v1158 = vmax.f32 %v1032, 0.0
    %v1159 = vmax.f32 %v1034, 0.0
    %v1160 = vmax.f32 %v1037, 0.0
    %v1161 = vmax.f32 %v1039, 0.0
    %v1162 = vmax.f32 %v1042, 0.0
    %v1163 = vmax.f32 %v1044, 0.0
    %v1164 = vmax.f32 %v1047, 0.0
    %v1165 = vmax.f32 %v1049, 0.0
    %v1166 = vmax.f32 %v1052, 0.0
    %v1167 = vmax.f32 %v1054, 0.0
    %v1168 = vmax.f32 %v1057, 0.0
    %v1169 = vmax.f32 %v1059, 0.0
    %v1170 = vmax.f32 %v1062, 0.0
    %v1171 = vmax.f32 %v1064, 0.0
    %v1172 = vmax.f32 %v1067, 0.0
    %v1173 = vmax.f32 %v1069, 0.0
    %v1174 = vmax.f32 %v1072, 0.0
    %v1175 = vmax.f32 %v1074, 0.0
    %v1176 = vmax.f32 %v1077, 0.0
    %v1177 = vmax.f32 %v1079, 0.0
    %v1178 = vmax.f32 %v1082, 0.0
    %v1179 = vmax.f32 %v1084, 0.0
    %v1180 = vmax.f32 %v1087, 0.0
    %v1181 = vmax.f32 %v1089, 0.0
    %v1182 = vmax.f32 %v1092, 0.0
    %v1183 = vmax.f32 %v1094, 0.0
    %v1184 = vmax.f32 %v1097, 0.0
    %v1185 = vmax.f32 %v1099, 0.0
    %v1186 = vmax.f32 %v1102, 0.0
    %v1187 = vmax.f32 %v1104, 0.0
    %v1188 = vmax.f32 %v1107, 0.0
    %v1189 = vmax.f32 %v1109, 0.0
    %v1190 = vmax.f32 %v1112, 0.0
    %v1191 = vmax.f32 %v1114, 0.0
    %v1192 = vmax.f32 %v1117, 0.0
    %v1193 = vmax.f32 %v1119, 0.0
    %v1194 = vmax.f32 %v1122, 0.0
    %v1195 = vmax.f32 %v1124, 0.0
    %v1196 = vmax.f32 %v1127, 0.0
    %v1197 = vmax.f32 %v1129, 0.0
    %v1198 = vmax.f32 %v1132, 0.0
    %v1199 = vmax.f32 %v1134, 0.0
    %v1200 = vpack.c.bf16 %v1137, %v1136
    %v1201 = vpack.c.bf16 %v1139, %v1138
    %v1202 = vpack.c.bf16 %v1141, %v1140
    %v1203 = vpack.c.bf16 %v1143, %v1142
    %v1204 = vpack.c.bf16 %v1145, %v1144
    %v1205 = vpack.c.bf16 %v1147, %v1146
    %v1206 = vpack.c.bf16 %v1149, %v1148
    %v1207 = vpack.c.bf16 %v1151, %v1150
    %v1208 = vpack.c.bf16 %v1153, %v1152
    %v1209 = vpack.c.bf16 %v1155, %v1154
    %v1210 = vpack.c.bf16 %v1157, %v1156
    %v1211 = vpack.c.bf16 %v1159, %v1158
    %v1212 = vpack.c.bf16 %v1161, %v1160
    %v1213 = vpack.c.bf16 %v1163, %v1162
    %v1214 = vpack.c.bf16 %v1165, %v1164
    %v1215 = vpack.c.bf16 %v1167, %v1166
    %v1216 = vpack.c.bf16 %v1169, %v1168
    %v1217 = vpack.c.bf16 %v1171, %v1170
    %v1218 = vpack.c.bf16 %v1173, %v1172
    %v1219 = vpack.c.bf16 %v1175, %v1174
    %v1220 = vpack.c.bf16 %v1177, %v1176
    %v1221 = vpack.c.bf16 %v1179, %v1178
    %v1222 = vpack.c.bf16 %v1181, %v1180
    %v1223 = vpack.c.bf16 %v1183, %v1182
    %v1224 = vpack.c.bf16 %v1185, %v1184
    %v1225 = vpack.c.bf16 %v1187, %v1186
    %v1226 = vpack.c.bf16 %v1189, %v1188
    %v1227 = vpack.c.bf16 %v1191, %v1190
    %v1228 = vpack.c.bf16 %v1193, %v1192
    %v1229 = vpack.c.bf16 %v1195, %v1194
    %v1230 = vpack.c.bf16 %v1197, %v1196
    %v1231 = vpack.c.bf16 %v1199, %v1198
    %v1232 = vld [vmem:[%s7] sm:$0xf]
    %v1233 = vld [vmem:[%s8] sm:$0xff]
    %1235 = vset.pattern.permute.xlu0 0
    %1236 = vperm.xlu0 %1235, %v1233
    %v1237 = vpop.permute.xlu0 %1236
    %vm1239 = vcmask 261120
    %v1241 = vsel %vm1239, %v1232, 0
    %v1244 = vsel %vm1239, %v1200, 0
    %v1247 = vsel %vm1239, %v1201, 0
    %v1250 = vsel %vm1239, %v1202, 0
    %v1253 = vsel %vm1239, %v1203, 0
    %v1256 = vsel %vm1239, %v1204, 0
    %v1259 = vsel %vm1239, %v1205, 0
    %v1262 = vsel %vm1239, %v1206, 0
    %v1265 = vsel %vm1239, %v1207, 0
    %v1268 = vsel %vm1239, %v1208, 0
    %v1271 = vsel %vm1239, %v1209, 0
    %v1274 = vsel %vm1239, %v1210, 0
    %v1277 = vsel %vm1239, %v1211, 0
    %v1280 = vsel %vm1239, %v1212, 0
    %v1283 = vsel %vm1239, %v1213, 0
    %v1286 = vsel %vm1239, %v1214, 0
    %v1289 = vsel %vm1239, %v1215, 0
    %v1292 = vsel %vm1239, %v1216, 0
    %v1295 = vsel %vm1239, %v1217, 0
    %v1298 = vsel %vm1239, %v1218, 0
    %v1301 = vsel %vm1239, %v1219, 0
    %v1304 = vsel %vm1239, %v1220, 0
    %v1307 = vsel %vm1239, %v1221, 0
    %v1310 = vsel %vm1239, %v1222, 0
    %v1313 = vsel %vm1239, %v1223, 0
    %v1316 = vsel %vm1239, %v1224, 0
    %v1319 = vsel %vm1239, %v1225, 0
    %v1322 = vsel %vm1239, %v1226, 0
    %v1325 = vsel %vm1239, %v1227, 0
    %v1328 = vsel %vm1239, %v1228, 0
    %v1331 = vsel %vm1239, %v1229, 0
    %v1334 = vsel %vm1239, %v1230, 0
    %v1337 = vsel %vm1239, %v1231, 0
    %1339 = vmatpush.bf16.xpose.msra.mxu0 %v1265
    %1340 = vmatpush.bf16.xpose.msra.mxu0 %v1262
    %1341 = vmatpush.bf16.xpose.msra.mxu0 %v1259
    %1342 = vmatpush.bf16.xpose.msra.mxu0 %v1256
    %1343 = vmatpush.bf16.xpose.msra.mxu0 %v1253
    %1344 = vmatpush.bf16.xpose.msra.mxu0 %v1250
    %1345 = vmatpush.bf16.xpose.msra.mxu0 %v1247
    %1346 = vmatpush.bf16.xpose.msra.mxu0 %v1244
    %1347 = vmatmul.bf16.gmra.mxu0 %v1241
    %v1348 = vpop.f32.mrf.mxu0
    %v1349 = vadd.f32 %v1237, %v1348
    %v1350 = vpop.f32.mrf.mxu0
    %1351 = vdwg.mxu0
    %1352 = vmatpush.bf16.xpose.msra.mxu0 %v1289
    %1353 = vmatpush.bf16.xpose.msra.mxu0 %v1286
    %1354 = vmatpush.bf16.xpose.msra.mxu0 %v1283
    %1355 = vmatpush.bf16.xpose.msra.mxu0 %v1280
    %1356 = vmatpush.bf16.xpose.msra.mxu0 %v1277
    %1357 = vmatpush.bf16.xpose.msra.mxu0 %v1274
    %1358 = vmatpush.bf16.xpose.msra.mxu0 %v1271
    %1359 = vmatpush.bf16.xpose.msra.mxu0 %v1268
    %1360 = vmatmul.bf16.gmra.mxu0 %v1241
    %v1361 = vpop.f32.mrf.mxu0
    %v1362 = vadd.f32 %v1237, %v1361
    %v1363 = vpop.f32.mrf.mxu0
    %1364 = vdwg.mxu0
    %1365 = vmatpush.bf16.xpose.msra.mxu0 %v1313
    %1366 = vmatpush.bf16.xpose.msra.mxu0 %v1310
    %1367 = vmatpush.bf16.xpose.msra.mxu0 %v1307
    %1368 = vmatpush.bf16.xpose.msra.mxu0 %v1304
    %1369 = vmatpush.bf16.xpose.msra.mxu0 %v1301
    %1370 = vmatpush.bf16.xpose.msra.mxu0 %v1298
    %1371 = vmatpush.bf16.xpose.msra.mxu0 %v1295
    %1372 = vmatpush.bf16.xpose.msra.mxu0 %v1292
    %1373 = vmatmul.bf16.gmra.mxu0 %v1241
    %v1374 = vpop.f32.mrf.mxu0
    %v1375 = vadd.f32 %v1237, %v1374
    %v1376 = vpop.f32.mrf.mxu0
    %1377 = vdwg.mxu0
    %1378 = vmatpush.bf16.xpose.msra.mxu0 %v1337
    %1379 = vmatpush.bf16.xpose.msra.mxu0 %v1334
    %1380 = vmatpush.bf16.xpose.msra.mxu0 %v1331
    %1381 = vmatpush.bf16.xpose.msra.mxu0 %v1328
    %1382 = vmatpush.bf16.xpose.msra.mxu0 %v1325
    %1383 = vmatpush.bf16.xpose.msra.mxu0 %v1322
    %1384 = vmatpush.bf16.xpose.msra.mxu0 %v1319
    %1385 = vmatpush.bf16.xpose.msra.mxu0 %v1316
    %1386 = vmatmul.bf16.gmra.mxu0 %v1241
    %v1387 = vpop.f32.mrf.mxu0
    %v1388 = vadd.f32 %v1237, %v1387
    %v1389 = vpop.f32.mrf.mxu0
    %1390 = vdwg.mxu0
    %v1391 = vmax.f32 %v1349, 0.0
    %v1392 = vmax.f32 %v1362, 0.0
    %v1393 = vmax.f32 %v1375, 0.0
    %v1394 = vmax.f32 %v1388, 0.0
    %1395 = vst [vmem:[#allocation2] sm:$0xff] %v1391
    %1396 = vst [vmem:[#allocation2 + $0x8] sm:$0xff] %v1392
    %1397 = vst [vmem:[#allocation2 + $0x10] sm:$0xff] %v1393
    %1398 = vst [vmem:[#allocation2 + $0x18] sm:$0xff] %v1394
    // Predicated region
    $region38: #{tpu_custom_call.1} parent=1 // pred_check
      _
    $region39: #{tpu_custom_call.1} parent=1 // pred_check_branch
      %1400 = sbr.rel (0) target = $region41
    $region40: #{tpu_custom_call.1} parent=1 // pred_region
      %1402 = vsyncadd [#allocation3], 0
      %s1404 = sshll.u32 [#allocation2], 4
      %s1405 = int_to_ptr.vmem [resolvable:$true] %s1404
      %s1406 = sshll.u32 %s9, 4
      %s1407 = int_to_ptr.hbm [resolvable:$true] %s1406
      %1409 = dma.vmem_to_hbm [thread:$0]  %s1405, 512, %s1407, [#allocation3]
    $region41: #{tpu_custom_call.1} parent=1 // pred_fallthru
      _
    // Predicated region
    $region42: #{tpu_custom_call.1} parent=1 // pred_check
      _
    $region43: #{tpu_custom_call.1} parent=1 // pred_check_branch
      %1411 = sbr.rel (0) target = $region45
    $region44: #{tpu_custom_call.1} parent=1 // pred_region
      %1413 = dma.done [#allocation3], 512
    $region45: #{tpu_custom_call.1} parent=1 // pred_fallthru
      _
    %1414 = vsyncpa [#allocation3], 1

</llo_original>
